<compile_context>
chip_gen: v7x
topology: tpu7x:2x2x1
jax: 0.10.0
libtpu: 0.0.40
codegen_flags: <defaults>
</compile_context>

<pallas_src>
import functools

import jax
import jax.numpy as jnp
from jax import lax
from jax.experimental import pallas as pl
from jax.experimental.pallas import tpu as pltpu


def mlp_kernel(x_ref, w_in_ref, b_in_ref, w_h1_ref, b_h1_ref,
               w_h2_ref, b_h2_ref, w_out_ref, b_out_ref, o_ref, *, n_layer):
    # Activations are kept transposed: (features, batch), batch on lanes.
    # Each layer computes h_next^T = W @ h^T + b_col  (== nn.Linear transposed).
    # input_layer + relu;  x_ref is x^T: (n_feature, bm).
    h = jnp.dot(w_in_ref[...], x_ref[...],
                preferred_element_type=jnp.float32) + b_in_ref[...]
    h = jnp.maximum(h, 0.0)
    # hidden1 + relu
    h = jnp.dot(w_h1_ref[...], h.astype(w_h1_ref.dtype),
                preferred_element_type=jnp.float32) + b_h1_ref[...]
    h = jnp.maximum(h, 0.0)

    # n_layer repeated applications of hidden2 (shared weights) + relu.
    # Hoist the shared weight read AND the bias lane-broadcast out of the loop
    # (JAX does not CSE repeated ref reads / broadcast_in_dim).
    w_h2 = w_h2_ref[...]
    b_h2 = jnp.broadcast_to(b_h2_ref[...], h.shape)

    def hidden2_step(hh):
        return jnp.maximum(
            jnp.dot(w_h2, hh.astype(w_h2.dtype),
                    preferred_element_type=jnp.float32) + b_h2, 0.0)

    if n_layer <= 4:
        for _ in range(n_layer):
            h = hidden2_step(h)
    else:
        # Bound code size / vreg live ranges for deep hidden2 chains.
        # TODO(synk): drive the MXU explicitly (matmul_push_rhs once for w_h2,
        # matmul_acc_lhs/pop per iteration) if the hidden2 chain ever dominates.
        h = lax.fori_loop(0, n_layer, lambda _, hh: hidden2_step(hh), h,
                          unroll=2)

    # predict (no activation) -> (n_output, bm): lane-dense store.
    out = jnp.dot(w_out_ref[...], h.astype(w_out_ref.dtype),
                  preferred_element_type=jnp.float32) + b_out_ref[...]
    o_ref[...] = out.astype(o_ref.dtype)


def _round_up(x, m):
    return ((x + m - 1) // m) * m


def _tpu_info():
    """(vmem_capacity_bytes, multi_tensorcore) with safe fallbacks."""
    vmem_cap = 64 << 20          # conservative default (v7x per-TC VMEM)
    multi_tc = False
    try:
        info = pltpu.get_tpu_info()
        vmem_cap = int(getattr(info, "vmem_capacity_bytes", vmem_cap))
    except Exception:
        pass
    try:
        kind = jax.devices()[0].device_kind.lower()
        multi_tc = ("v7" in kind) or ("7x" in kind)
    except Exception:
        pass
    return vmem_cap, multi_tc


def _choose_tiling(B, multi_tc):
    """Pick (padded_batch, batch_tile).

    Tiles are lane-aligned (multiple of 128).  Single-TC chips (v5e/v6e) take
    the biggest tile (fewest 0.35us grid steps); v7x keeps >= 2 grid steps so
    dimension_semantics=("parallel",) feeds both TensorCores, including the
    128 <= B < 256 case (padded to 256)."""
    if B < 128:
        return B, B                       # single full-dim block is legal
    cap = 8192 if multi_tc else 16384     # x tile is only ~1.6-3.2 MiB bf16
    min_steps = 2 if multi_tc else 1
    bm = min(cap, _round_up(pl.cdiv(B, min_steps), 128))
    # Shrink the tile if whole-batch padding waste would be excessive
    # (only reachable when bm == cap, so halving stays a multiple of 128).
    while bm > 1024 and _round_up(B, bm) - B > max(B // 8, 1024):
        bm //= 2
    b_pad = _round_up(B, bm)
    if b_pad // bm < min_steps:
        b_pad = min_steps * bm
    return b_pad, bm


def net_forward(x, params, *, n_layer, bm=None, compute_dtype=jnp.bfloat16):
    """Pallas forward pass of Net.  x: (B, n_feature) float32.

    params are torch-layout: weights (out, in), biases (out,).
    compute_dtype=jnp.bfloat16 (default) halves the streamed-x HBM traffic and
    uses MXU-native bf16 inputs; accumulation and biases are always f32.
    """
    B, n_feature = x.shape
    w_in, b_in, w_h1, b_h1, w_h2, b_h2, w_out, b_out = params
    n_neuron1 = w_in.shape[0]
    n_neuron2 = w_h1.shape[0]
    n_output = w_out.shape[0]

    vmem_cap, multi_tc = _tpu_info()
    itemsize = jnp.dtype(compute_dtype).itemsize

    b_pad, bm_auto = _choose_tiling(B, multi_tc)
    if bm is None:
        bm = bm_auto
    else:
        b_pad = _round_up(B, bm)
    assert b_pad % bm == 0, "padded batch must be a multiple of the batch tile"

    # Streamed activation: x^T (features on sublanes, batch on lanes).  Cast to
    # the compute dtype BEFORE transposing so the materialized copy is as small
    # as possible; no contraction-dim padding (100 stays 100).
    # TODO(synk): if the upstream pipeline can hand x over already transposed
    # (feature, batch), this wrapper-side copy disappears entirely.
    x_c = x.astype(compute_dtype)
    if b_pad == B:
        x_t = x_c.T
    else:
        x_t = jnp.zeros((n_feature, b_pad), compute_dtype).at[:, :B].set(x_c.T)

    w_in_c = w_in.astype(compute_dtype)
    w_h1_c = w_h1.astype(compute_dtype)
    w_h2_c = w_h2.astype(compute_dtype)
    w_out_c = w_out.astype(compute_dtype)
    # Biases as (out, 1) columns (broadcast over the lane/batch axis), kept f32.
    b_in_c = b_in.reshape(n_neuron1, 1).astype(jnp.float32)
    b_h1_c = b_h1.reshape(n_neuron2, 1).astype(jnp.float32)
    b_h2_c = b_h2.reshape(n_neuron2, 1).astype(jnp.float32)
    b_out_c = b_out.reshape(n_output, 1).astype(jnp.float32)

    # Grid-invariant weight/bias blocks (index_map always (0, 0)); only the
    # x^T tile and the output tile actually stream through the pipeline.
    full = lambda shape: pl.BlockSpec(shape, lambda i: (0, 0))

    weight_arrays = (w_in_c, b_in_c, w_h1_c, b_h1_c, w_h2_c, b_h2_c,
                     w_out_c, b_out_c)
    weight_bytes = sum(int(a.size) * int(a.dtype.itemsize) for a in weight_arrays)

    # Scoped-VMEM budget: double-buffered x/out tiles + resident weights + a
    # generous allowance for in-kernel activations, clamped to the chip.
    vmem_need = (2 * n_feature * bm * itemsize
                 + 2 * n_output * bm * 4
                 + 2 * weight_bytes
                 + 8 * max(n_neuron1, n_neuron2) * bm * 4)
    vmem_limit = int(min(max(2 * vmem_need, 32 << 20), vmem_cap * 3 // 4))

    cost = pl.CostEstimate(
        flops=2 * b_pad * (n_feature * n_neuron1 + n_neuron1 * n_neuron2
                           + n_layer * n_neuron2 * n_neuron2
                           + n_neuron2 * n_output),
        transcendentals=0,
        bytes_accessed=int(n_feature * b_pad * itemsize + weight_bytes
                           + b_pad * n_output * 4),
    )

    kernel = functools.partial(mlp_kernel, n_layer=n_layer)
    out_t = pl.pallas_call(
        kernel,
        out_shape=jax.ShapeDtypeStruct((n_output, b_pad), jnp.float32),
        grid_spec=pltpu.PrefetchScalarGridSpec(
            num_scalar_prefetch=0,
            grid=(b_pad // bm,),
            in_specs=[
                pl.BlockSpec((n_feature, bm), lambda i: (0, i)),   # x^T tile
                full((n_neuron1, n_feature)), full((n_neuron1, 1)),
                full((n_neuron2, n_neuron1)), full((n_neuron2, 1)),
                full((n_neuron2, n_neuron2)), full((n_neuron2, 1)),
                full((n_output, n_neuron2)), full((n_output, 1)),
            ],
            out_specs=pl.BlockSpec((n_output, bm), lambda i: (0, i)),
        ),
        compiler_params=pltpu.CompilerParams(
            dimension_semantics=("parallel",),
            vmem_limit_bytes=vmem_limit),
        cost_estimate=cost,
    )(x_t, w_in_c, b_in_c, w_h1_c, b_h1_c, w_h2_c, b_h2_c, w_out_c, b_out_c)

    return out_t[:, :B].T  # (B, n_output)


def init_params(key, n_feature, n_output, n_neuron1, n_neuron2):
    """torch.nn.Linear-style params: W is (out, in), b is (out,)."""
    ks = jax.random.split(key, 8)

    def lin(kw, kb, fan_in, fan_out):
        bound = 1.0 / jnp.sqrt(fan_in)
        w = jax.random.uniform(kw, (fan_out, fan_in), jnp.float32, -bound, bound)
        b = jax.random.uniform(kb, (fan_out,), jnp.float32, -bound, bound)
        return w, b

    w_in, b_in = lin(ks[0], ks[1], n_feature, n_neuron1)
    w_h1, b_h1 = lin(ks[2], ks[3], n_neuron1, n_neuron2)
    w_h2, b_h2 = lin(ks[4], ks[5], n_neuron2, n_neuron2)
    w_out, b_out = lin(ks[6], ks[7], n_neuron2, n_output)
    return (w_in, b_in, w_h1, b_h1, w_h2, b_h2, w_out, b_out)


def reference_forward(x, params, *, n_layer):
    w_in, b_in, w_h1, b_h1, w_h2, b_h2, w_out, b_out = params
    h = jnp.maximum(x @ w_in.T + b_in, 0.0)
    h = jnp.maximum(h @ w_h1.T + b_h1, 0.0)
    for _ in range(n_layer):
        h = jnp.maximum(h @ w_h2.T + b_h2, 0.0)
    return h @ w_out.T + b_out


if __name__ == "__main__":
    # Shapes implied by the script: 100 input features (x = data.loc[:, 1:100]),
    # small hidden sizes, scalar pressure-prediction output.
    n_feature, n_output, n_neuron1, n_neuron2 = 100, 1, 32, 32
    batch = 16

    key = jax.random.PRNGKey(0)
    k_x, k_p = jax.random.split(key)
    x = jax.random.normal(k_x, (batch, n_feature), jnp.float32)
    params = init_params(k_p, n_feature, n_output, n_neuron1, n_neuron2)

    # 1) f32 path, n_layer=2 (unrolled hidden2 chain): tight check.
    ref2 = reference_forward(x, params, n_layer=2)
    out_f32 = jax.block_until_ready(
        net_forward(x, params, n_layer=2, compute_dtype=jnp.float32))
    assert out_f32.shape == (batch, n_output)
    assert jnp.allclose(out_f32, ref2, atol=2e-5, rtol=2e-5), \
        float(jnp.max(jnp.abs(out_f32 - ref2)))

    # 2) f32 path, n_layer=6: exercises the lax.fori_loop hidden2 chain.
    ref6 = reference_forward(x, params, n_layer=6)
    out_deep = jax.block_until_ready(
        net_forward(x, params, n_layer=6, compute_dtype=jnp.float32))
    assert jnp.allclose(out_deep, ref6, atol=1e-4, rtol=1e-4), \
        float(jnp.max(jnp.abs(out_deep - ref6)))

    # 3) default bf16-input path (halves the dominant x HBM stream): loose
    #    check, since inputs/weights are quantized to bf16 (f32 accumulation).
    out_bf16 = jax.block_until_ready(net_forward(x, params, n_layer=2))
    assert out_bf16.shape == (batch, n_output)
    assert jnp.allclose(out_bf16, ref2, atol=3e-2, rtol=3e-2), \
        float(jnp.max(jnp.abs(out_bf16 - ref2)))

    print("KERNEL_OK")
</pallas_src>

<mosaic_0001>
module attributes {stable_mosaic.version = 11 : i64} {
  func.func @mlp_kernel(%arg0: i32, %arg1: memref<100x16xf32, #tpu.memory_space<vmem>>, %arg2: memref<32x100xf32, #tpu.memory_space<vmem>>, %arg3: memref<32x1xf32, #tpu.memory_space<vmem>>, %arg4: memref<32x32xf32, #tpu.memory_space<vmem>>, %arg5: memref<32x1xf32, #tpu.memory_space<vmem>>, %arg6: memref<32x32xf32, #tpu.memory_space<vmem>>, %arg7: memref<32x1xf32, #tpu.memory_space<vmem>>, %arg8: memref<1x32xf32, #tpu.memory_space<vmem>>, %arg9: memref<1x1xf32, #tpu.memory_space<vmem>>, %arg10: memref<1x16xf32, #tpu.memory_space<vmem>>) attributes {dimension_semantics = [#tpu.dimension_semantics<parallel>], iteration_bounds = array<i64: 1>, scalar_prefetch = 0 : i64, scratch_operands = 0 : i64, tpu.core_type = #tpu.core_type<tc>, window_params = [{transform_indices = @transform_0, window_bounds = array<i64: 100, 16>}, {pipeline_mode = #tpu.pipeline_mode<synchronous>, transform_indices = @transform_1, window_bounds = array<i64: 32, 100>}, {pipeline_mode = #tpu.pipeline_mode<synchronous>, transform_indices = @transform_2, window_bounds = array<i64: 32, 1>}, {pipeline_mode = #tpu.pipeline_mode<synchronous>, transform_indices = @transform_3, window_bounds = array<i64: 32, 32>}, {pipeline_mode = #tpu.pipeline_mode<synchronous>, transform_indices = @transform_4, window_bounds = array<i64: 32, 1>}, {pipeline_mode = #tpu.pipeline_mode<synchronous>, transform_indices = @transform_5, window_bounds = array<i64: 32, 32>}, {pipeline_mode = #tpu.pipeline_mode<synchronous>, transform_indices = @transform_6, window_bounds = array<i64: 32, 1>}, {pipeline_mode = #tpu.pipeline_mode<synchronous>, transform_indices = @transform_7, window_bounds = array<i64: 1, 32>}, {pipeline_mode = #tpu.pipeline_mode<synchronous>, transform_indices = @transform_8, window_bounds = array<i64: 1, 1>}, {transform_indices = @transform_9, window_bounds = array<i64: 1, 16>}]} {
    %c0 = arith.constant 0 : index
    %c0_0 = arith.constant 0 : index
    %0 = vector.load %arg2[%c0, %c0_0] : memref<32x100xf32, #tpu.memory_space<vmem>>, vector<32x100xf32>
    %c0_1 = arith.constant 0 : index
    %c0_2 = arith.constant 0 : index
    %1 = vector.load %arg1[%c0_1, %c0_2] : memref<100x16xf32, #tpu.memory_space<vmem>>, vector<100x16xf32>
    %cst = arith.constant dense<0.000000e+00> : vector<32x16xf32>
    %2 = tpu.matmul %0, %1, %cst {dimension_numbers = #tpu.dot_dimension_numbers<[1], [0], [0], [1], [0, 0, 1, 1], [], []>} : vector<32x100xf32>, vector<100x16xf32>, vector<32x16xf32> -> vector<32x16xf32>
    %c0_3 = arith.constant 0 : index
    %c0_4 = arith.constant 0 : index
    %3 = vector.load %arg3[%c0_3, %c0_4] : memref<32x1xf32, #tpu.memory_space<vmem>>, vector<32x1xf32>
    %4 = vector.broadcast %3 : vector<32x1xf32> to vector<32x16xf32>
    %5 = arith.addf %2, %4 : vector<32x16xf32>
    %cst_5 = arith.constant 0.000000e+00 : f32
    %6 = vector.broadcast %cst_5 : f32 to vector<32x16xf32>
    %7 = arith.maximumf %5, %6 : vector<32x16xf32>
    %c0_6 = arith.constant 0 : index
    %c0_7 = arith.constant 0 : index
    %8 = vector.load %arg4[%c0_6, %c0_7] : memref<32x32xf32, #tpu.memory_space<vmem>>, vector<32x32xf32>
    %cst_8 = arith.constant dense<0.000000e+00> : vector<32x16xf32>
    %9 = tpu.matmul %8, %7, %cst_8 {dimension_numbers = #tpu.dot_dimension_numbers<[1], [0], [0], [1], [0, 0, 1, 1], [], []>} : vector<32x32xf32>, vector<32x16xf32>, vector<32x16xf32> -> vector<32x16xf32>
    %c0_9 = arith.constant 0 : index
    %c0_10 = arith.constant 0 : index
    %10 = vector.load %arg5[%c0_9, %c0_10] : memref<32x1xf32, #tpu.memory_space<vmem>>, vector<32x1xf32>
    %11 = vector.broadcast %10 : vector<32x1xf32> to vector<32x16xf32>
    %12 = arith.addf %9, %11 : vector<32x16xf32>
    %cst_11 = arith.constant 0.000000e+00 : f32
    %13 = vector.broadcast %cst_11 : f32 to vector<32x16xf32>
    %14 = arith.maximumf %12, %13 : vector<32x16xf32>
    %c0_12 = arith.constant 0 : index
    %c0_13 = arith.constant 0 : index
    %15 = vector.load %arg6[%c0_12, %c0_13] : memref<32x32xf32, #tpu.memory_space<vmem>>, vector<32x32xf32>
    %c0_14 = arith.constant 0 : index
    %c0_15 = arith.constant 0 : index
    %16 = vector.load %arg7[%c0_14, %c0_15] : memref<32x1xf32, #tpu.memory_space<vmem>>, vector<32x1xf32>
    %17 = vector.shape_cast %16 : vector<32x1xf32> to vector<32x1xf32>
    %18 = vector.broadcast %17 : vector<32x1xf32> to vector<32x16xf32>
    %cst_16 = arith.constant dense<0.000000e+00> : vector<32x16xf32>
    %19 = tpu.matmul %15, %14, %cst_16 {dimension_numbers = #tpu.dot_dimension_numbers<[1], [0], [0], [1], [0, 0, 1, 1], [], []>} : vector<32x32xf32>, vector<32x16xf32>, vector<32x16xf32> -> vector<32x16xf32>
    %20 = arith.addf %19, %18 : vector<32x16xf32>
    %cst_17 = arith.constant 0.000000e+00 : f32
    %21 = vector.broadcast %cst_17 : f32 to vector<32x16xf32>
    %22 = arith.maximumf %20, %21 : vector<32x16xf32>
    %cst_18 = arith.constant dense<0.000000e+00> : vector<32x16xf32>
    %23 = tpu.matmul %15, %22, %cst_18 {dimension_numbers = #tpu.dot_dimension_numbers<[1], [0], [0], [1], [0, 0, 1, 1], [], []>} : vector<32x32xf32>, vector<32x16xf32>, vector<32x16xf32> -> vector<32x16xf32>
    %24 = arith.addf %23, %18 : vector<32x16xf32>
    %cst_19 = arith.constant 0.000000e+00 : f32
    %25 = vector.broadcast %cst_19 : f32 to vector<32x16xf32>
    %26 = arith.maximumf %24, %25 : vector<32x16xf32>
    %c0_20 = arith.constant 0 : index
    %c0_21 = arith.constant 0 : index
    %27 = vector.load %arg8[%c0_20, %c0_21] : memref<1x32xf32, #tpu.memory_space<vmem>>, vector<1x32xf32>
    %cst_22 = arith.constant dense<0.000000e+00> : vector<1x16xf32>
    %28 = tpu.matmul %27, %26, %cst_22 {dimension_numbers = #tpu.dot_dimension_numbers<[1], [0], [0], [1], [0, 0, 1, 1], [], []>} : vector<1x32xf32>, vector<32x16xf32>, vector<1x16xf32> -> vector<1x16xf32>
    %c0_23 = arith.constant 0 : index
    %c0_24 = arith.constant 0 : index
    %29 = vector.load %arg9[%c0_23, %c0_24] : memref<1x1xf32, #tpu.memory_space<vmem>>, vector<1x1xf32>
    %30 = vector.broadcast %29 : vector<1x1xf32> to vector<1x16xf32>
    %31 = arith.addf %28, %30 : vector<1x16xf32>
    %c0_25 = arith.constant 0 : index
    %c0_26 = arith.constant 0 : index
    %32 = vector.load %arg10[%c0_25, %c0_26] : memref<1x16xf32, #tpu.memory_space<vmem>>, vector<1x16xf32>
    tpu.vector_store %arg10[%c0_25, %c0_26], %31 {strides = array<i32>} : memref<1x16xf32, #tpu.memory_space<vmem>>, vector<1x16xf32>,
    return
  }
  func.func @transform_0(%arg0: i32) -> (i32, i32) {
    %c0_i32 = arith.constant 0 : i32
    %c0_i32_0 = arith.constant 0 : i32
    return %c0_i32, %arg0 : i32, i32
  }
  func.func @transform_1(%arg0: i32) -> (i32, i32) {
    %c0_i32 = arith.constant 0 : i32
    %c0_i32_0 = arith.constant 0 : i32
    %c0_i32_1 = arith.constant 0 : i32
    return %c0_i32, %c0_i32_0 : i32, i32
  }
  func.func @transform_2(%arg0: i32) -> (i32, i32) {
    %c0_i32 = arith.constant 0 : i32
    %c0_i32_0 = arith.constant 0 : i32
    %c0_i32_1 = arith.constant 0 : i32
    return %c0_i32, %c0_i32_0 : i32, i32
  }
  func.func @transform_3(%arg0: i32) -> (i32, i32) {
    %c0_i32 = arith.constant 0 : i32
    %c0_i32_0 = arith.constant 0 : i32
    %c0_i32_1 = arith.constant 0 : i32
    return %c0_i32, %c0_i32_0 : i32, i32
  }
  func.func @transform_4(%arg0: i32) -> (i32, i32) {
    %c0_i32 = arith.constant 0 : i32
    %c0_i32_0 = arith.constant 0 : i32
    %c0_i32_1 = arith.constant 0 : i32
    return %c0_i32, %c0_i32_0 : i32, i32
  }
  func.func @transform_5(%arg0: i32) -> (i32, i32) {
    %c0_i32 = arith.constant 0 : i32
    %c0_i32_0 = arith.constant 0 : i32
    %c0_i32_1 = arith.constant 0 : i32
    return %c0_i32, %c0_i32_0 : i32, i32
  }
  func.func @transform_6(%arg0: i32) -> (i32, i32) {
    %c0_i32 = arith.constant 0 : i32
    %c0_i32_0 = arith.constant 0 : i32
    %c0_i32_1 = arith.constant 0 : i32
    return %c0_i32, %c0_i32_0 : i32, i32
  }
  func.func @transform_7(%arg0: i32) -> (i32, i32) {
    %c0_i32 = arith.constant 0 : i32
    %c0_i32_0 = arith.constant 0 : i32
    %c0_i32_1 = arith.constant 0 : i32
    return %c0_i32, %c0_i32_0 : i32, i32
  }
  func.func @transform_8(%arg0: i32) -> (i32, i32) {
    %c0_i32 = arith.constant 0 : i32
    %c0_i32_0 = arith.constant 0 : i32
    %c0_i32_1 = arith.constant 0 : i32
    return %c0_i32, %c0_i32_0 : i32, i32
  }
  func.func @transform_9(%arg0: i32) -> (i32, i32) {
    %c0_i32 = arith.constant 0 : i32
    %c0_i32_0 = arith.constant 0 : i32
    return %c0_i32, %arg0 : i32, i32
  }
}

</mosaic_0001>

<llo_original>
// kernel: tpu_custom_call.1
$region0: #{tpu_custom_call.1}
  #allocation0 [shape = 'u32[]', space=smem, size = 0x4, offset = 0x4, fixed_abs, tag = 'smem constant byte address 0x4 - core index']
  #allocation1 [shape = 'u32[144,128]{1,0:T(1,128)}', space=vmem, size = 0x12000, scoped, tag = 'internal scratch']
  #allocation2 [shape = 'f32[1,1]{1,0:T(1,128)S(1)}', space=vmem, size = 0x200, scoped, tag = 'scoped memory for tpu_custom_call.1']
  %s0 = inlined_call_operand.vmem [shape: f32[100,16], index: 0, kind: input, shape index: {}]
  %s1 = inlined_call_operand.vmem [shape: f32[32,100], index: 1, kind: input, shape index: {}]
  %s2 = inlined_call_operand.vmem [shape: f32[32,1], index: 2, kind: input, shape index: {}]
  %s3 = inlined_call_operand.vmem [shape: f32[32,32], index: 3, kind: input, shape index: {}]
  %s4 = inlined_call_operand.vmem [shape: f32[32,1], index: 4, kind: input, shape index: {}]
  %s5 = inlined_call_operand.vmem [shape: f32[32,32], index: 5, kind: input, shape index: {}]
  %s6 = inlined_call_operand.vmem [shape: f32[32,1], index: 6, kind: input, shape index: {}]
  %s7 = inlined_call_operand.vmem [shape: f32[1,32], index: 7, kind: input, shape index: {}]
  %s8 = inlined_call_operand.<no memory space> [shape: f32[1,1], index: 8, kind: input, shape index: {}]
  %s9 = inlined_call_operand.hbm [shape: f32[1,16], index: 9, kind: output, shape index: {}]
  %s10 = sld [smem:[#allocation0]]
  $region46: #{tpu_custom_call.1} parent=0
    _
  %s12 = ssub.s32 1, %s10
  %s13 = scalar_select 0, %s12, %s10
  %v14 = vstv %s8
  %15 = vst [vmem:[#allocation2] sm:$0x1] %v14
  $region1: #{tpu_custom_call.1} parent=0
    #allocation3 [shape = 'u8[512]{0}', space=vmem, size = 0x400, scoped, tag = 'output window, operand 0, single buffered']
    #allocation4 [shape = 's32[1]{0}', space=sflag, size = 0x4, scoped, tag = 'scoped memory for tpu_custom_call.1']
    %16 = vsyncpa [#allocation4], 0
    // Predicated region
    $region2: #{tpu_custom_call.1} parent=1 // pred_check
      _
    $region3: #{tpu_custom_call.1} parent=1 // pred_check_branch
      %18 = sbr.rel (0) target = $region5
    $region4: #{tpu_custom_call.1} parent=1 // pred_region
      _
    $region5: #{tpu_custom_call.1} parent=1 // pred_fallthru
      _
    // Predicated region
    $region6: #{tpu_custom_call.1} parent=1 // pred_check
      _
    $region7: #{tpu_custom_call.1} parent=1 // pred_check_branch
      %20 = sbr.rel (0) target = $region9
    $region8: #{tpu_custom_call.1} parent=1 // pred_region
      _
    $region9: #{tpu_custom_call.1} parent=1 // pred_fallthru
      _
    // Predicated region
    $region10: #{tpu_custom_call.1} parent=1 // pred_check
      _
    $region11: #{tpu_custom_call.1} parent=1 // pred_check_branch
      %22 = sbr.rel (0) target = $region13
    $region12: #{tpu_custom_call.1} parent=1 // pred_region
      _
    $region13: #{tpu_custom_call.1} parent=1 // pred_fallthru
      _
    // Predicated region
    $region14: #{tpu_custom_call.1} parent=1 // pred_check
      _
    $region15: #{tpu_custom_call.1} parent=1 // pred_check_branch
      %24 = sbr.rel (0) target = $region17
    $region16: #{tpu_custom_call.1} parent=1 // pred_region
      _
    $region17: #{tpu_custom_call.1} parent=1 // pred_fallthru
      _
    // Predicated region
    $region18: #{tpu_custom_call.1} parent=1 // pred_check
      _
    $region19: #{tpu_custom_call.1} parent=1 // pred_check_branch
      %26 = sbr.rel (0) target = $region21
    $region20: #{tpu_custom_call.1} parent=1 // pred_region
      _
    $region21: #{tpu_custom_call.1} parent=1 // pred_fallthru
      _
    // Predicated region
    $region22: #{tpu_custom_call.1} parent=1 // pred_check
      _
    $region23: #{tpu_custom_call.1} parent=1 // pred_check_branch
      %28 = sbr.rel (0) target = $region25
    $region24: #{tpu_custom_call.1} parent=1 // pred_region
      _
    $region25: #{tpu_custom_call.1} parent=1 // pred_fallthru
      _
    // Predicated region
    $region26: #{tpu_custom_call.1} parent=1 // pred_check
      _
    $region27: #{tpu_custom_call.1} parent=1 // pred_check_branch
      %30 = sbr.rel (0) target = $region29
    $region28: #{tpu_custom_call.1} parent=1 // pred_region
      _
    $region29: #{tpu_custom_call.1} parent=1 // pred_fallthru
      _
    // Predicated region
    $region30: #{tpu_custom_call.1} parent=1 // pred_check
      _
    $region31: #{tpu_custom_call.1} parent=1 // pred_check_branch
      %32 = sbr.rel (0) target = $region33
    $region32: #{tpu_custom_call.1} parent=1 // pred_region
      _
    $region33: #{tpu_custom_call.1} parent=1 // pred_fallthru
      _
    // Predicated region
    $region34: #{tpu_custom_call.1} parent=1 // pred_check
      _
    $region35: #{tpu_custom_call.1} parent=1 // pred_check_branch
      %34 = sbr.rel (0) target = $region37
    $region36: #{tpu_custom_call.1} parent=1 // pred_region
      _
    $region37: #{tpu_custom_call.1} parent=1 // pred_fallthru
      _
    %v35 = vld [vmem:[%s1] sm:$0xff]
    %v36 = vld [vmem:[%s1 + $0x8] sm:$0xff]
    %v37 = vld [vmem:[%s1 + $0x10] sm:$0xff]
    %v38 = vld [vmem:[%s1 + $0x18] sm:$0xff]
    %v39 = vld [vmem:[%s0] sm:$0xff]
    %v40 = vld [vmem:[%s0 + $0x8] sm:$0xff]
    %v41 = vld [vmem:[%s0 + $0x10] sm:$0xff]
    %v42 = vld [vmem:[%s0 + $0x18] sm:$0xff]
    %v43 = vld [vmem:[%s0 + $0x20] sm:$0xff]
    %v44 = vld [vmem:[%s0 + $0x28] sm:$0xff]
    %v45 = vld [vmem:[%s0 + $0x30] sm:$0xff]
    %v46 = vld [vmem:[%s0 + $0x38] sm:$0xff]
    %v47 = vld [vmem:[%s0 + $0x40] sm:$0xff]
    %v48 = vld [vmem:[%s0 + $0x48] sm:$0xff]
    %v49 = vld [vmem:[%s0 + $0x50] sm:$0xff]
    %v50 = vld [vmem:[%s0 + $0x58] sm:$0xff]
    %v51 = vld [vmem:[%s0 + $0x60] sm:$0xf]
    %v52 = vld [vmem:[%s2] sm:$0xff]
    %v53 = vld [vmem:[%s2 + $0x8] sm:$0xff]
    %v54 = vld [vmem:[%s2 + $0x10] sm:$0xff]
    %v55 = vld [vmem:[%s2 + $0x18] sm:$0xff]
    %57 = vset.pattern.permute.xlu0 0
    %58 = vperm.xlu0 %57, %v52
    %v59 = vpop.permute.xlu0 %58
    %62 = vset.pattern.permute.xlu0 0
    %63 = vperm.xlu0 %62, %v53
    %v64 = vpop.permute.xlu0 %63
    %67 = vset.pattern.permute.xlu0 0
    %68 = vperm.xlu0 %67, %v54
    %v69 = vpop.permute.xlu0 %68
    %72 = vset.pattern.permute.xlu0 0
    %73 = vperm.xlu0 %72, %v55
    %v74 = vpop.permute.xlu0 %73
    %vm76 = vcmask 818176
    %v78 = vsel %vm76, %v35, 0
    %v81 = vsel %vm76, %v36, 0
    %v84 = vsel %vm76, %v37, 0
    %v87 = vsel %vm76, %v38, 0
    %vm89 = vcmask 1043456
    %v91 = vsel %vm89, %v51, 0
    %93 = vmatprep.subr.mxu0 0.0
    %94 = vmatpush1.msra.mxu0 %v39
    %95 = vmatprep.subr.mxu0 0.0
    %96 = vmatpush1.msra.mxu0 %v40
    %97 = vmatprep.subr.mxu0 0.0
    %98 = vmatpush1.msra.mxu0 %v41
    %99 = vmatprep.subr.mxu0 0.0
    %100 = vmatpush1.msra.mxu0 %v42
    %101 = vmatprep.subr.mxu0 0.0
    %102 = vmatpush1.msra.mxu0 %v43
    %103 = vmatprep.subr.mxu0 0.0
    %104 = vmatpush1.msra.mxu0 %v44
    %105 = vmatprep.subr.mxu0 0.0
    %106 = vmatpush1.msra.mxu0 %v45
    %107 = vmatprep.subr.mxu0 0.0
    %108 = vmatpush1.msra.mxu0 %v46
    %109 = vmatprep.subr.mxu0 0.0
    %110 = vmatpush1.msra.mxu0 %v47
    %111 = vmatprep.subr.mxu0 0.0
    %112 = vmatpush1.msra.mxu0 %v48
    %113 = vmatprep.subr.mxu0 0.0
    %114 = vmatpush1.msra.mxu0 %v49
    %115 = vmatprep.subr.mxu0 0.0
    %116 = vmatpush1.msra.mxu0 %v50
    %117 = vmatprep.subr.mxu0 0.0
    %118 = vmatpush1.msra.mxu0 %v91
    %119 = vmatprep.subr.mxu0 0.0
    %120 = vmatpush1.msra.mxu0 0.0
    %121 = vmatprep.subr.mxu0 0.0
    %122 = vmatpush1.msra.mxu0 0.0
    %123 = vmatprep.subr.mxu0 0.0
    %124 = vmatpush1.msra.mxu0 0.0
    %125 = vmatprep.subr.mxu0 0.0
    %126 = vmatpush1.msra.mxu0 0.0
    %127 = vmatprep.subr.mxu0 0.0
    %128 = vmatpush1.msra.mxu0 0.0
    %129 = vmatprep.subr.mxu0 0.0
    %130 = vmatpush1.msra.mxu0 0.0
    %131 = vmatprep.subr.mxu0 0.0
    %132 = vmatpush1.msra.mxu0 0.0
    %133 = vmatprep.subr.mxu0 0.0
    %134 = vmatpush1.msra.mxu0 0.0
    %135 = vmatprep.subr.mxu0 0.0
    %136 = vmatpush1.msra.mxu0 0.0
    %137 = vmatprep.subr.mxu0 0.0
    %138 = vmatpush1.msra.mxu0 0.0
    %139 = vmatprep.subr.mxu0 0.0
    %140 = vmatpush1.msra.mxu0 0.0
    %141 = vmatprep.subr.mxu0 0.0
    %142 = vmatpush1.msra.mxu0 0.0
    %143 = vmatprep.subr.mxu0 0.0
    %144 = vmatpush1.msra.mxu0 0.0
    %145 = vmatprep.subr.mxu0 0.0
    %146 = vmatpush1.msra.mxu0 0.0
    %147 = vmatprep.subr.mxu0 0.0
    %148 = vmatpush1.msra.mxu0 0.0
    %149 = vmatprep.subr.mxu0 0.0
    %150 = vmatpush1.msra.mxu0 0.0
    %151 = vmatprep.subr.mxu0 0.0
    %152 = vmatpush1.msra.mxu0 0.0
    %153 = vmatprep.subr.mxu0 0.0
    %154 = vmatpush1.msra.mxu0 0.0
    %155 = vmatprep.subr.mxu0 0.0
    %156 = vmatpush1.msra.mxu0 0.0
    %157 = vmatprep.mubr.f32.mxu0 0.0
    %158 = vmatmul.mubr.f32.gmra.mrb[0].mxu0 %v78
    %v159 = vpop.f32.mrb[0].mxu0
    %v160 = vadd.f32 %v59, %v159
    %v161 = vpop.f32.mrb[0].mxu0
    %162 = vmatprep.mubr.f32.mxu0 0.0
    %163 = vmatmul.mubr.f32.gmra.mrb[0].mxu0 %v81
    %v164 = vpop.f32.mrb[0].mxu0
    %v165 = vadd.f32 %v64, %v164
    %v166 = vpop.f32.mrb[0].mxu0
    %167 = vmatprep.mubr.f32.mxu0 0.0
    %168 = vmatmul.mubr.f32.gmra.mrb[0].mxu0 %v84
    %v169 = vpop.f32.mrb[0].mxu0
    %v170 = vadd.f32 %v69, %v169
    %v171 = vpop.f32.mrb[0].mxu0
    %172 = vmatprep.mubr.f32.mxu0 0.0
    %173 = vmatmul.mubr.f32.gmra.mrb[0].mxu0 %v87
    %v174 = vpop.f32.mrb[0].mxu0
    %v175 = vadd.f32 %v74, %v174
    %v176 = vpop.f32.mrb[0].mxu0
    %177 = vdwg.mxu0
    %v178 = vmax.f32 %v160, 0.0
    %v179 = vmax.f32 %v165, 0.0
    %v180 = vmax.f32 %v170, 0.0
    %v181 = vmax.f32 %v175, 0.0
    %v182 = vld [vmem:[%s3] sm:$0xff]
    %v183 = vld [vmem:[%s3 + $0x8] sm:$0xff]
    %v184 = vld [vmem:[%s3 + $0x10] sm:$0xff]
    %v185 = vld [vmem:[%s3 + $0x18] sm:$0xff]
    %v186 = vld [vmem:[%s4] sm:$0xff]
    %v187 = vld [vmem:[%s4 + $0x8] sm:$0xff]
    %v188 = vld [vmem:[%s4 + $0x10] sm:$0xff]
    %v189 = vld [vmem:[%s4 + $0x18] sm:$0xff]
    %191 = vset.pattern.permute.xlu0 0
    %192 = vperm.xlu0 %191, %v186
    %v193 = vpop.permute.xlu0 %192
    %196 = vset.pattern.permute.xlu0 0
    %197 = vperm.xlu0 %196, %v187
    %v198 = vpop.permute.xlu0 %197
    %201 = vset.pattern.permute.xlu0 0
    %202 = vperm.xlu0 %201, %v188
    %v203 = vpop.permute.xlu0 %202
    %206 = vset.pattern.permute.xlu0 0
    %207 = vperm.xlu0 %206, %v189
    %v208 = vpop.permute.xlu0 %207
    %vm210 = vcmask 261120
    %v212 = vsel %vm210, %v182, 0
    %v215 = vsel %vm210, %v183, 0
    %v218 = vsel %vm210, %v184, 0
    %v221 = vsel %vm210, %v185, 0
    %223 = vmatprep.subr.mxu0 0.0
    %224 = vmatpush1.msra.mxu0 %v178
    %225 = vmatprep.subr.mxu0 0.0
    %226 = vmatpush1.msra.mxu0 %v179
    %227 = vmatprep.subr.mxu0 0.0
    %228 = vmatpush1.msra.mxu0 %v180
    %229 = vmatprep.subr.mxu0 0.0
    %230 = vmatpush1.msra.mxu0 %v181
    %231 = vmatprep.subr.mxu0 0.0
    %232 = vmatpush1.msra.mxu0 0.0
    %233 = vmatprep.subr.mxu0 0.0
    %234 = vmatpush1.msra.mxu0 0.0
    %235 = vmatprep.subr.mxu0 0.0
    %236 = vmatpush1.msra.mxu0 0.0
    %237 = vmatprep.subr.mxu0 0.0
    %238 = vmatpush1.msra.mxu0 0.0
    %239 = vmatprep.subr.mxu0 0.0
    %240 = vmatpush1.msra.mxu0 0.0
    %241 = vmatprep.subr.mxu0 0.0
    %242 = vmatpush1.msra.mxu0 0.0
    %243 = vmatprep.subr.mxu0 0.0
    %244 = vmatpush1.msra.mxu0 0.0
    %245 = vmatprep.subr.mxu0 0.0
    %246 = vmatpush1.msra.mxu0 0.0
    %247 = vmatprep.subr.mxu0 0.0
    %248 = vmatpush1.msra.mxu0 0.0
    %249 = vmatprep.subr.mxu0 0.0
    %250 = vmatpush1.msra.mxu0 0.0
    %251 = vmatprep.subr.mxu0 0.0
    %252 = vmatpush1.msra.mxu0 0.0
    %253 = vmatprep.subr.mxu0 0.0
    %254 = vmatpush1.msra.mxu0 0.0
    %255 = vmatprep.subr.mxu0 0.0
    %256 = vmatpush1.msra.mxu0 0.0
    %257 = vmatprep.subr.mxu0 0.0
    %258 = vmatpush1.msra.mxu0 0.0
    %259 = vmatprep.subr.mxu0 0.0
    %260 = vmatpush1.msra.mxu0 0.0
    %261 = vmatprep.subr.mxu0 0.0
    %262 = vmatpush1.msra.mxu0 0.0
    %263 = vmatprep.subr.mxu0 0.0
    %264 = vmatpush1.msra.mxu0 0.0
    %265 = vmatprep.subr.mxu0 0.0
    %266 = vmatpush1.msra.mxu0 0.0
    %267 = vmatprep.subr.mxu0 0.0
    %268 = vmatpush1.msra.mxu0 0.0
    %269 = vmatprep.subr.mxu0 0.0
    %270 = vmatpush1.msra.mxu0 0.0
    %271 = vmatprep.subr.mxu0 0.0
    %272 = vmatpush1.msra.mxu0 0.0
    %273 = vmatprep.subr.mxu0 0.0
    %274 = vmatpush1.msra.mxu0 0.0
    %275 = vmatprep.subr.mxu0 0.0
    %276 = vmatpush1.msra.mxu0 0.0
    %277 = vmatprep.subr.mxu0 0.0
    %278 = vmatpush1.msra.mxu0 0.0
    %279 = vmatprep.subr.mxu0 0.0
    %280 = vmatpush1.msra.mxu0 0.0
    %281 = vmatprep.subr.mxu0 0.0
    %282 = vmatpush1.msra.mxu0 0.0
    %283 = vmatprep.subr.mxu0 0.0
    %284 = vmatpush1.msra.mxu0 0.0
    %285 = vmatprep.subr.mxu0 0.0
    %286 = vmatpush1.msra.mxu0 0.0
    %287 = vmatprep.mubr.f32.mxu0 0.0
    %288 = vmatmul.mubr.f32.gmra.mrb[0].mxu0 %v212
    %v289 = vpop.f32.mrb[0].mxu0
    %v290 = vadd.f32 %v193, %v289
    %v291 = vpop.f32.mrb[0].mxu0
    %292 = vmatprep.mubr.f32.mxu0 0.0
    %293 = vmatmul.mubr.f32.gmra.mrb[0].mxu0 %v215
    %v294 = vpop.f32.mrb[0].mxu0
    %v295 = vadd.f32 %v198, %v294
    %v296 = vpop.f32.mrb[0].mxu0
    %297 = vmatprep.mubr.f32.mxu0 0.0
    %298 = vmatmul.mubr.f32.gmra.mrb[0].mxu0 %v218
    %v299 = vpop.f32.mrb[0].mxu0
    %v300 = vadd.f32 %v203, %v299
    %v301 = vpop.f32.mrb[0].mxu0
    %302 = vmatprep.mubr.f32.mxu0 0.0
    %303 = vmatmul.mubr.f32.gmra.mrb[0].mxu0 %v221
    %v304 = vpop.f32.mrb[0].mxu0
    %v305 = vadd.f32 %v208, %v304
    %v306 = vpop.f32.mrb[0].mxu0
    %307 = vdwg.mxu0
    %v308 = vmax.f32 %v290, 0.0
    %v309 = vmax.f32 %v295, 0.0
    %v310 = vmax.f32 %v300, 0.0
    %v311 = vmax.f32 %v305, 0.0
    %v312 = vld [vmem:[%s5] sm:$0xff]
    %v313 = vld [vmem:[%s5 + $0x8] sm:$0xff]
    %v314 = vld [vmem:[%s5 + $0x10] sm:$0xff]
    %v315 = vld [vmem:[%s5 + $0x18] sm:$0xff]
    %v316 = vld [vmem:[%s6] sm:$0xff]
    %v317 = vld [vmem:[%s6 + $0x8] sm:$0xff]
    %v318 = vld [vmem:[%s6 + $0x10] sm:$0xff]
    %v319 = vld [vmem:[%s6 + $0x18] sm:$0xff]
    %321 = vset.pattern.permute.xlu0 0
    %322 = vperm.xlu0 %321, %v316
    %v323 = vpop.permute.xlu0 %322
    %326 = vset.pattern.permute.xlu0 0
    %327 = vperm.xlu0 %326, %v317
    %v328 = vpop.permute.xlu0 %327
    %331 = vset.pattern.permute.xlu0 0
    %332 = vperm.xlu0 %331, %v318
    %v333 = vpop.permute.xlu0 %332
    %336 = vset.pattern.permute.xlu0 0
    %337 = vperm.xlu0 %336, %v319
    %v338 = vpop.permute.xlu0 %337
    %v341 = vsel %vm210, %v312, 0
    %v344 = vsel %vm210, %v313, 0
    %v347 = vsel %vm210, %v314, 0
    %v350 = vsel %vm210, %v315, 0
    %352 = vmatprep.subr.mxu0 0.0
    %353 = vmatpush1.msra.mxu0 %v308
    %354 = vmatprep.subr.mxu0 0.0
    %355 = vmatpush1.msra.mxu0 %v309
    %356 = vmatprep.subr.mxu0 0.0
    %357 = vmatpush1.msra.mxu0 %v310
    %358 = vmatprep.subr.mxu0 0.0
    %359 = vmatpush1.msra.mxu0 %v311
    %360 = vmatprep.subr.mxu0 0.0
    %361 = vmatpush1.msra.mxu0 0.0
    %362 = vmatprep.subr.mxu0 0.0
    %363 = vmatpush1.msra.mxu0 0.0
    %364 = vmatprep.subr.mxu0 0.0
    %365 = vmatpush1.msra.mxu0 0.0
    %366 = vmatprep.subr.mxu0 0.0
    %367 = vmatpush1.msra.mxu0 0.0
    %368 = vmatprep.subr.mxu0 0.0
    %369 = vmatpush1.msra.mxu0 0.0
    %370 = vmatprep.subr.mxu0 0.0
    %371 = vmatpush1.msra.mxu0 0.0
    %372 = vmatprep.subr.mxu0 0.0
    %373 = vmatpush1.msra.mxu0 0.0
    %374 = vmatprep.subr.mxu0 0.0
    %375 = vmatpush1.msra.mxu0 0.0
    %376 = vmatprep.subr.mxu0 0.0
    %377 = vmatpush1.msra.mxu0 0.0
    %378 = vmatprep.subr.mxu0 0.0
    %379 = vmatpush1.msra.mxu0 0.0
    %380 = vmatprep.subr.mxu0 0.0
    %381 = vmatpush1.msra.mxu0 0.0
    %382 = vmatprep.subr.mxu0 0.0
    %383 = vmatpush1.msra.mxu0 0.0
    %384 = vmatprep.subr.mxu0 0.0
    %385 = vmatpush1.msra.mxu0 0.0
    %386 = vmatprep.subr.mxu0 0.0
    %387 = vmatpush1.msra.mxu0 0.0
    %388 = vmatprep.subr.mxu0 0.0
    %389 = vmatpush1.msra.mxu0 0.0
    %390 = vmatprep.subr.mxu0 0.0
    %391 = vmatpush1.msra.mxu0 0.0
    %392 = vmatprep.subr.mxu0 0.0
    %393 = vmatpush1.msra.mxu0 0.0
    %394 = vmatprep.subr.mxu0 0.0
    %395 = vmatpush1.msra.mxu0 0.0
    %396 = vmatprep.subr.mxu0 0.0
    %397 = vmatpush1.msra.mxu0 0.0
    %398 = vmatprep.subr.mxu0 0.0
    %399 = vmatpush1.msra.mxu0 0.0
    %400 = vmatprep.subr.mxu0 0.0
    %401 = vmatpush1.msra.mxu0 0.0
    %402 = vmatprep.subr.mxu0 0.0
    %403 = vmatpush1.msra.mxu0 0.0
    %404 = vmatprep.subr.mxu0 0.0
    %405 = vmatpush1.msra.mxu0 0.0
    %406 = vmatprep.subr.mxu0 0.0
    %407 = vmatpush1.msra.mxu0 0.0
    %408 = vmatprep.subr.mxu0 0.0
    %409 = vmatpush1.msra.mxu0 0.0
    %410 = vmatprep.subr.mxu0 0.0
    %411 = vmatpush1.msra.mxu0 0.0
    %412 = vmatprep.subr.mxu0 0.0
    %413 = vmatpush1.msra.mxu0 0.0
    %414 = vmatprep.subr.mxu0 0.0
    %415 = vmatpush1.msra.mxu0 0.0
    %416 = vmatprep.mubr.f32.mxu0 0.0
    %417 = vmatmul.mubr.f32.gmra.mrb[0].mxu0 %v341
    %v418 = vpop.f32.mrb[0].mxu0
    %v419 = vadd.f32 %v323, %v418
    %v420 = vpop.f32.mrb[0].mxu0
    %421 = vmatprep.mubr.f32.mxu0 0.0
    %422 = vmatmul.mubr.f32.gmra.mrb[0].mxu0 %v344
    %v423 = vpop.f32.mrb[0].mxu0
    %v424 = vadd.f32 %v328, %v423
    %v425 = vpop.f32.mrb[0].mxu0
    %426 = vmatprep.mubr.f32.mxu0 0.0
    %427 = vmatmul.mubr.f32.gmra.mrb[0].mxu0 %v347
    %v428 = vpop.f32.mrb[0].mxu0
    %v429 = vadd.f32 %v333, %v428
    %v430 = vpop.f32.mrb[0].mxu0
    %431 = vmatprep.mubr.f32.mxu0 0.0
    %432 = vmatmul.mubr.f32.gmra.mrb[0].mxu0 %v350
    %v433 = vpop.f32.mrb[0].mxu0
    %v434 = vadd.f32 %v338, %v433
    %v435 = vpop.f32.mrb[0].mxu0
    %436 = vdwg.mxu0
    %v437 = vmax.f32 %v419, 0.0
    %v438 = vmax.f32 %v424, 0.0
    %v439 = vmax.f32 %v429, 0.0
    %v440 = vmax.f32 %v434, 0.0
    %441 = vmatprep.subr.mxu0 0.0
    %442 = vmatpush1.msra.mxu0 %v437
    %443 = vmatprep.subr.mxu0 0.0
    %444 = vmatpush1.msra.mxu0 %v438
    %445 = vmatprep.subr.mxu0 0.0
    %446 = vmatpush1.msra.mxu0 %v439
    %447 = vmatprep.subr.mxu0 0.0
    %448 = vmatpush1.msra.mxu0 %v440
    %449 = vmatprep.subr.mxu0 0.0
    %450 = vmatpush1.msra.mxu0 0.0
    %451 = vmatprep.subr.mxu0 0.0
    %452 = vmatpush1.msra.mxu0 0.0
    %453 = vmatprep.subr.mxu0 0.0
    %454 = vmatpush1.msra.mxu0 0.0
    %455 = vmatprep.subr.mxu0 0.0
    %456 = vmatpush1.msra.mxu0 0.0
    %457 = vmatprep.subr.mxu0 0.0
    %458 = vmatpush1.msra.mxu0 0.0
    %459 = vmatprep.subr.mxu0 0.0
    %460 = vmatpush1.msra.mxu0 0.0
    %461 = vmatprep.subr.mxu0 0.0
    %462 = vmatpush1.msra.mxu0 0.0
    %463 = vmatprep.subr.mxu0 0.0
    %464 = vmatpush1.msra.mxu0 0.0
    %465 = vmatprep.subr.mxu0 0.0
    %466 = vmatpush1.msra.mxu0 0.0
    %467 = vmatprep.subr.mxu0 0.0
    %468 = vmatpush1.msra.mxu0 0.0
    %469 = vmatprep.subr.mxu0 0.0
    %470 = vmatpush1.msra.mxu0 0.0
    %471 = vmatprep.subr.mxu0 0.0
    %472 = vmatpush1.msra.mxu0 0.0
    %473 = vmatprep.subr.mxu0 0.0
    %474 = vmatpush1.msra.mxu0 0.0
    %475 = vmatprep.subr.mxu0 0.0
    %476 = vmatpush1.msra.mxu0 0.0
    %477 = vmatprep.subr.mxu0 0.0
    %478 = vmatpush1.msra.mxu0 0.0
    %479 = vmatprep.subr.mxu0 0.0
    %480 = vmatpush1.msra.mxu0 0.0
    %481 = vmatprep.subr.mxu0 0.0
    %482 = vmatpush1.msra.mxu0 0.0
    %483 = vmatprep.subr.mxu0 0.0
    %484 = vmatpush1.msra.mxu0 0.0
    %485 = vmatprep.subr.mxu0 0.0
    %486 = vmatpush1.msra.mxu0 0.0
    %487 = vmatprep.subr.mxu0 0.0
    %488 = vmatpush1.msra.mxu0 0.0
    %489 = vmatprep.subr.mxu0 0.0
    %490 = vmatpush1.msra.mxu0 0.0
    %491 = vmatprep.subr.mxu0 0.0
    %492 = vmatpush1.msra.mxu0 0.0
    %493 = vmatprep.subr.mxu0 0.0
    %494 = vmatpush1.msra.mxu0 0.0
    %495 = vmatprep.subr.mxu0 0.0
    %496 = vmatpush1.msra.mxu0 0.0
    %497 = vmatprep.subr.mxu0 0.0
    %498 = vmatpush1.msra.mxu0 0.0
    %499 = vmatprep.subr.mxu0 0.0
    %500 = vmatpush1.msra.mxu0 0.0
    %501 = vmatprep.subr.mxu0 0.0
    %502 = vmatpush1.msra.mxu0 0.0
    %503 = vmatprep.subr.mxu0 0.0
    %504 = vmatpush1.msra.mxu0 0.0
    %505 = vmatprep.mubr.f32.mxu0 0.0
    %506 = vmatmul.mubr.f32.gmra.mrb[0].mxu0 %v341
    %v507 = vpop.f32.mrb[0].mxu0
    %v508 = vadd.f32 %v323, %v507
    %v509 = vpop.f32.mrb[0].mxu0
    %510 = vmatprep.mubr.f32.mxu0 0.0
    %511 = vmatmul.mubr.f32.gmra.mrb[0].mxu0 %v344
    %v512 = vpop.f32.mrb[0].mxu0
    %v513 = vadd.f32 %v328, %v512
    %v514 = vpop.f32.mrb[0].mxu0
    %515 = vmatprep.mubr.f32.mxu0 0.0
    %516 = vmatmul.mubr.f32.gmra.mrb[0].mxu0 %v347
    %v517 = vpop.f32.mrb[0].mxu0
    %v518 = vadd.f32 %v333, %v517
    %v519 = vpop.f32.mrb[0].mxu0
    %520 = vmatprep.mubr.f32.mxu0 0.0
    %521 = vmatmul.mubr.f32.gmra.mrb[0].mxu0 %v350
    %v522 = vpop.f32.mrb[0].mxu0
    %v523 = vadd.f32 %v338, %v522
    %v524 = vpop.f32.mrb[0].mxu0
    %525 = vdwg.mxu0
    %v526 = vmax.f32 %v508, 0.0
    %v527 = vmax.f32 %v513, 0.0
    %v528 = vmax.f32 %v518, 0.0
    %v529 = vmax.f32 %v523, 0.0
    %v530 = vld [vmem:[%s7] sm:$0x1]
    %v531 = vld [vmem:[#allocation2] sm:$0x1]
    %533 = vset.pattern.permute.xlu0 0
    %534 = vperm.xlu0 %533, %v531
    %v535 = vpop.permute.xlu0 %534
    %v537 = vlaneseq
    %v538 = vshrl.u32 %v537, 7
    %v539 = vsub.s32 0, %v538
    %v540 = vrot.slane %v535, %v539
    %v542 = vsel %vm210, %v530, 0
    %544 = vmatprep.subr.mxu0 0.0
    %545 = vmatpush1.msra.mxu0 %v526
    %546 = vmatprep.subr.mxu0 0.0
    %547 = vmatpush1.msra.mxu0 %v527
    %548 = vmatprep.subr.mxu0 0.0
    %549 = vmatpush1.msra.mxu0 %v528
    %550 = vmatprep.subr.mxu0 0.0
    %551 = vmatpush1.msra.mxu0 %v529
    %552 = vmatprep.subr.mxu0 0.0
    %553 = vmatpush1.msra.mxu0 0.0
    %554 = vmatprep.subr.mxu0 0.0
    %555 = vmatpush1.msra.mxu0 0.0
    %556 = vmatprep.subr.mxu0 0.0
    %557 = vmatpush1.msra.mxu0 0.0
    %558 = vmatprep.subr.mxu0 0.0
    %559 = vmatpush1.msra.mxu0 0.0
    %560 = vmatprep.subr.mxu0 0.0
    %561 = vmatpush1.msra.mxu0 0.0
    %562 = vmatprep.subr.mxu0 0.0
    %563 = vmatpush1.msra.mxu0 0.0
    %564 = vmatprep.subr.mxu0 0.0
    %565 = vmatpush1.msra.mxu0 0.0
    %566 = vmatprep.subr.mxu0 0.0
    %567 = vmatpush1.msra.mxu0 0.0
    %568 = vmatprep.subr.mxu0 0.0
    %569 = vmatpush1.msra.mxu0 0.0
    %570 = vmatprep.subr.mxu0 0.0
    %571 = vmatpush1.msra.mxu0 0.0
    %572 = vmatprep.subr.mxu0 0.0
    %573 = vmatpush1.msra.mxu0 0.0
    %574 = vmatprep.subr.mxu0 0.0
    %575 = vmatpush1.msra.mxu0 0.0
    %576 = vmatprep.subr.mxu0 0.0
    %577 = vmatpush1.msra.mxu0 0.0
    %578 = vmatprep.subr.mxu0 0.0
    %579 = vmatpush1.msra.mxu0 0.0
    %580 = vmatprep.subr.mxu0 0.0
    %581 = vmatpush1.msra.mxu0 0.0
    %582 = vmatprep.subr.mxu0 0.0
    %583 = vmatpush1.msra.mxu0 0.0
    %584 = vmatprep.subr.mxu0 0.0
    %585 = vmatpush1.msra.mxu0 0.0
    %586 = vmatprep.subr.mxu0 0.0
    %587 = vmatpush1.msra.mxu0 0.0
    %588 = vmatprep.subr.mxu0 0.0
    %589 = vmatpush1.msra.mxu0 0.0
    %590 = vmatprep.subr.mxu0 0.0
    %591 = vmatpush1.msra.mxu0 0.0
    %592 = vmatprep.subr.mxu0 0.0
    %593 = vmatpush1.msra.mxu0 0.0
    %594 = vmatprep.subr.mxu0 0.0
    %595 = vmatpush1.msra.mxu0 0.0
    %596 = vmatprep.subr.mxu0 0.0
    %597 = vmatpush1.msra.mxu0 0.0
    %598 = vmatprep.subr.mxu0 0.0
    %599 = vmatpush1.msra.mxu0 0.0
    %600 = vmatprep.subr.mxu0 0.0
    %601 = vmatpush1.msra.mxu0 0.0
    %602 = vmatprep.subr.mxu0 0.0
    %603 = vmatpush1.msra.mxu0 0.0
    %604 = vmatprep.subr.mxu0 0.0
    %605 = vmatpush1.msra.mxu0 0.0
    %606 = vmatprep.subr.mxu0 0.0
    %607 = vmatpush1.msra.mxu0 0.0
    %608 = vmatprep.mubr.f32.mxu0 0.0
    %609 = vmatmul.mubr.f32.gmra.mrb[0].mxu0 %v542
    %v610 = vpop.f32.mrb[0].mxu0
    %v611 = vadd.f32 %v540, %v610
    %v612 = vpop.f32.mrb[0].mxu0
    %613 = vdwg.mxu0
    %vm614 = vcmask 122880
    %615 = vst.msk [vmem:[#allocation3] sm:$0x1] %vm614, %v611
    // Predicated region
    $region38: #{tpu_custom_call.1} parent=1 // pred_check
      _
    $region39: #{tpu_custom_call.1} parent=1 // pred_check_branch
      %617 = sbr.rel (0) target = $region41
    $region40: #{tpu_custom_call.1} parent=1 // pred_region
      %s619 = ssub.s32 16, 16
      %620 = vsyncadd [#allocation4], %s619
      %s622 = sshll.u32 [#allocation3], 4
      %s623 = int_to_ptr.vmem [resolvable:$true] %s622
      %625 = dma.vmem_to_hbm [thread:$0]  %s623, 16, %s9, [#allocation4]
    $region41: #{tpu_custom_call.1} parent=1 // pred_fallthru
      _
    // Predicated region
    $region42: #{tpu_custom_call.1} parent=1 // pred_check
      _
    $region43: #{tpu_custom_call.1} parent=1 // pred_check_branch
      %627 = sbr.rel (0) target = $region45
    $region44: #{tpu_custom_call.1} parent=1 // pred_region
      %628 = dma.done [#allocation4], 16
    $region45: #{tpu_custom_call.1} parent=1 // pred_fallthru
      _
    %629 = vsyncpa [#allocation4], 1

</llo_original>
